<compile_context>
chip_gen: v7x
topology: tpu7x:2x2x1
jax: 0.10.0
libtpu: 0.0.40
codegen_flags: <defaults>
</compile_context>

<pallas_src>
import functools

import jax
import jax.numpy as jnp
import numpy as np
from jax.experimental import pallas as pl
from jax.experimental.pallas import tpu as pltpu

BN_EPS = 1e-5

_VMEM_LIMIT_BYTES = 32 * 1024 * 1024    # safe scoped-VMEM limit on v5e/v6e/v7x
_BLOCK_BUDGET_BYTES = 20 * 1024 * 1024  # per-step block budget (headroom under the limit)


def _edge_masks(H, W):
    """(4, H*W) 0/1 masks over the flattened image: [w-1 valid, w+1 valid, h-1 valid, h+1 valid]."""
    hh, ww = np.meshgrid(np.arange(H), np.arange(W), indexing="ij")
    masks = [(ww >= 1), (ww <= W - 2), (hh >= 1), (hh <= H - 2)]
    return np.stack([m.reshape(-1) for m in masks]).astype(np.float32)


def _dw_pw_relu(x, masks, wdw, wpw, B, Cin, Cout, W, HW):
    """Depthwise 3x3 (padding=1) + pointwise 1x1 + ReLU for a block of B images.

    x     : (B*Cin, HW)  channels on sublanes, flattened spatial on lanes
    masks : (4, HW)      edge-validity masks [col-1, col+1, row-1, row+1]
    wdw   : (B*Cin, 9)   depthwise weights tiled over the B images, tap k = (dy+1)*3 + (dx+1)
    wpw   : (Cout, Cin)  pointwise weights
    Returns a list of B arrays of shape (Cout, HW) (ReLU already applied).
    """
    col_l, col_r = masks[0:1, :], masks[1:2, :]
    row_u, row_d = masks[2:3, :], masks[3:4, :]

    # Horizontal neighbours, masked once and shared by all three dy rows (the masks reproduce
    # the zero padding; the lane rotations stay in-register on the XLU).
    xl = pltpu.roll(x, 1, axis=1) * col_l            # x[.., w-1]
    xr = pltpu.roll(x, HW - 1, axis=1) * col_r       # x[.., w+1]
    taps = (xl, x, xr)

    # Separable 3x3: weighted 3-tap row sums per dy, then a single row rotation + row mask for
    # dy = +-1  (4 rotations + 4 mask multiplies instead of 8 + 8).
    acc = None
    for j, (dy, rmask) in enumerate(((-1, row_u), (0, None), (1, row_d))):
        row = None
        for i in range(3):                           # dx = -1, 0, +1
            term = taps[i] * wdw[:, j * 3 + i:j * 3 + i + 1]
            row = term if row is None else row + term
        if dy != 0:
            row = pltpu.roll(row, (-dy * W) % HW, axis=1) * rmask
        acc = row if acc is None else acc + row      # (B*Cin, HW) depthwise result

    # Pointwise 1x1 as VPU broadcast-MACs over Cin (channels far too small for the MXU here).
    # TODO(synk): add an MXU path ((HW_tile, Cin) @ (Cin, Cout) with spatial on sublanes) for
    # MobileNet-scale channel counts (Cin/Cout >= ~32).
    ys = []
    for b in range(B):
        y = None
        for ci in range(Cin):
            contrib = wpw[:, ci:ci + 1] * acc[b * Cin + ci:b * Cin + ci + 1, :]
            y = contrib if y is None else y + contrib
        ys.append(jnp.maximum(y, 0.0))               # ReLU
    return ys


def _dsb_fused_kernel(x_ref, masks_ref, wdw_ref, wpw_ref, gamma_ref, beta_ref, o_ref,
                      *, B, Cin, Cout, W, HW):
    """Fused single-step kernel: conv stack + ReLU + train-mode BatchNorm, batch resident in VMEM."""
    ys = _dw_pw_relu(x_ref[...], masks_ref[...], wdw_ref[...], wpw_ref[...],
                     B, Cin, Cout, W, HW)

    # BatchNorm statistics over (batch, spatial) per output channel. y is resident, so use the
    # numerically safer centred two-pass form (no E[y^2]-E[y]^2 cancellation).
    inv_count = 1.0 / float(B * HW)
    s = None
    for y in ys:
        part = jnp.sum(y, axis=1, keepdims=True)             # (Cout, 1)
        s = part if s is None else s + part
    mean = s * inv_count
    ss = None
    for y in ys:
        d = y - mean
        part = jnp.sum(d * d, axis=1, keepdims=True)
        ss = part if ss is None else ss + part
    var = ss * inv_count                                      # biased batch variance
    scale = gamma_ref[...] * jax.lax.rsqrt(var + BN_EPS)      # (Cout, 1)
    shift = beta_ref[...] - mean * scale

    for b, y in enumerate(ys):                                # lane-dense (Cout, HW) stores
        o_ref[b * Cout:(b + 1) * Cout, :] = y * scale + shift


def _dsb_pass1_kernel(x_ref, masks_ref, wdw_ref, wpw_ref, y_ref, stats_ref,
                      *, B, Cin, Cout, W, HW):
    """Fallback pass 1: conv stack + ReLU for B images; one per-block BN partial (sum, sum_sq)."""
    ys = _dw_pw_relu(x_ref[...], masks_ref[...], wdw_ref[...], wpw_ref[...],
                     B, Cin, Cout, W, HW)
    s = ss = None
    for b, y in enumerate(ys):
        y_ref[b * Cout:(b + 1) * Cout, :] = y
        ps = jnp.sum(y, axis=1, keepdims=True)
        pss = jnp.sum(y * y, axis=1, keepdims=True)
        s = ps if s is None else s + ps
        ss = pss if ss is None else ss + pss
    stats_ref[...] = jnp.concatenate([s, ss], axis=1)         # (Cout, 2): one tiny store / block


def _bn_apply_kernel(y_ref, scale_ref, shift_ref, o_ref):
    """Fallback pass 2: folded train-mode BatchNorm affine, o = y*scale + shift (per channel row)."""
    o_ref[...] = y_ref[...] * scale_ref[...] + shift_ref[...]


def _pick_block_batch(N, Cin, Cout, HW):
    """Largest divisor B of N that fills whole 8-row f32 sublane groups, keeps the double-buffered
    per-step x/y blocks inside the VMEM budget and (when possible) leaves >=2 grid steps so both
    v7x TensorCores get useful shards."""
    def fits(b):
        return 2 * b * (Cin + Cout) * HW * 4 <= _BLOCK_BUDGET_BYTES
    cands = [b for b in range(1, N + 1) if N % b == 0 and (b * Cin) % 8 == 0 and fits(b)]
    if not cands:
        # TODO(synk): pad the batch (or fall back to a squeezed per-image layout) when no divisor
        # of N fills 8-row sublane groups within the VMEM budget.
        return 1
    multi = [b for b in cands if N // b >= 2]
    return max(multi) if multi else max(cands)


@functools.partial(jax.jit, static_argnames=("force_two_pass",))
def depthwise_separable_block(x_nchw, w_dw, w_pw, gamma, beta, *, force_two_pass=False):
    """x_nchw: (N, Cin, H, W); w_dw: (Cin,1,3,3); w_pw: (Cout,Cin,1,1); gamma/beta: (Cout,)."""
    N, Cin, H, W = x_nchw.shape
    Cout = w_pw.shape[0]
    HW = H * W

    # NCHW -> (N*Cin, H*W) is a free reshape; rows are batch-major, channel-minor.
    x2 = x_nchw.reshape(N * Cin, HW).astype(jnp.float32)
    wpw_k = w_pw.reshape(Cout, Cin).astype(jnp.float32)
    masks = jnp.asarray(_edge_masks(H, W))                    # (4, HW) compile-time constant

    # ---- fused fast path: whole batch (x, y and ~3x working set) fits the per-step budget ----
    fused_bytes = 3 * N * (Cin + Cout) * HW * 4
    if not force_two_pass and fused_bytes <= _BLOCK_BUDGET_BYTES:
        wdw_k = jnp.tile(w_dw.reshape(Cin, 9).astype(jnp.float32), (N, 1))   # (N*Cin, 9)
        out = pl.pallas_call(
            functools.partial(_dsb_fused_kernel, B=N, Cin=Cin, Cout=Cout, W=W, HW=HW),
            grid=(1,),
            in_specs=[
                pl.BlockSpec((N * Cin, HW), lambda i: (0, 0)),
                pl.BlockSpec((4, HW), lambda i: (0, 0)),
                pl.BlockSpec((N * Cin, 9), lambda i: (0, 0)),
                pl.BlockSpec((Cout, Cin), lambda i: (0, 0)),
                pl.BlockSpec((Cout, 1), lambda i: (0, 0)),
                pl.BlockSpec((Cout, 1), lambda i: (0, 0)),
            ],
            out_specs=pl.BlockSpec((N * Cout, HW), lambda i: (0, 0)),
            out_shape=jax.ShapeDtypeStruct((N * Cout, HW), jnp.float32),
            compiler_params=pltpu.CompilerParams(
                dimension_semantics=("arbitrary",),
                vmem_limit_bytes=_VMEM_LIMIT_BYTES),
        )(x2, masks, wdw_k, wpw_k,
          gamma.reshape(Cout, 1).astype(jnp.float32),
          beta.reshape(Cout, 1).astype(jnp.float32))
        return out.reshape(N, Cout, H, W)                      # free reshape back to NCHW

    # ---- fallback: batched two-pass (y round-trips HBM once; stats reduced in the wrapper) ----
    B = _pick_block_batch(N, Cin, Cout, HW)
    NB = N // B
    wdw_k = jnp.tile(w_dw.reshape(Cin, 9).astype(jnp.float32), (B, 1))       # (B*Cin, 9)
    cparams = pltpu.CompilerParams(
        dimension_semantics=("parallel",),             # independent batch blocks (megacore ok)
        vmem_limit_bytes=_VMEM_LIMIT_BYTES)

    y, stats = pl.pallas_call(
        functools.partial(_dsb_pass1_kernel, B=B, Cin=Cin, Cout=Cout, W=W, HW=HW),
        grid=(NB,),
        in_specs=[
            pl.BlockSpec((B * Cin, HW), lambda n: (n, 0)),      # B images per grid step
            pl.BlockSpec((4, HW), lambda n: (0, 0)),            # edge masks (resident)
            pl.BlockSpec((B * Cin, 9), lambda n: (0, 0)),       # depthwise weights (tiled over B)
            pl.BlockSpec((Cout, Cin), lambda n: (0, 0)),        # pointwise weights
        ],
        out_specs=[
            pl.BlockSpec((B * Cout, HW), lambda n: (n, 0)),     # lane-dense y blocks
            pl.BlockSpec((None, Cout, 2), lambda n: (n, 0, 0)), # per-block BN partials
        ],
        out_shape=[
            jax.ShapeDtypeStruct((N * Cout, HW), jnp.float32),
            jax.ShapeDtypeStruct((NB, Cout, 2), jnp.float32),
        ],
        compiler_params=cparams,
    )(x2, masks, wdw_k, wpw_k)

    # Tiny cross-block reduction: fold train-mode BN (biased variance) to per-channel scale/shift.
    # TODO(synk): the E[y^2]-E[y]^2 form can cancel for very large N*H*W; switch to a shifted
    # accumulation if this fallback is ever used at that scale.
    sums = jnp.sum(stats, axis=0)                               # (Cout, 2)
    count = float(N * HW)
    mean = sums[:, 0] / count
    var = jnp.maximum(sums[:, 1] / count - mean * mean, 0.0)
    inv = jax.lax.rsqrt(var + BN_EPS)
    scale = gamma.astype(jnp.float32) * inv
    shift = beta.astype(jnp.float32) - mean * scale
    scale_rows = jnp.tile(scale.reshape(Cout, 1), (B, 1))       # rows match the y block layout
    shift_rows = jnp.tile(shift.reshape(Cout, 1), (B, 1))

    out = pl.pallas_call(
        _bn_apply_kernel,
        grid=(NB,),
        in_specs=[
            pl.BlockSpec((B * Cout, HW), lambda n: (n, 0)),
            pl.BlockSpec((B * Cout, 1), lambda n: (0, 0)),
            pl.BlockSpec((B * Cout, 1), lambda n: (0, 0)),
        ],
        out_specs=pl.BlockSpec((B * Cout, HW), lambda n: (n, 0)),
        out_shape=jax.ShapeDtypeStruct((N * Cout, HW), jnp.float32),
        input_output_aliases={0: 0},                            # apply in place over y
        compiler_params=cparams,
    )(y, scale_rows, shift_rows)
    return out.reshape(N, Cout, H, W)


def _reference(x_nchw, w_dw, w_pw, gamma, beta):
    """Pure-JAX reference matching the PyTorch forward (train-mode BN, batch statistics)."""
    Cin = x_nchw.shape[1]
    dw = jax.lax.conv_general_dilated(
        x_nchw, w_dw, window_strides=(1, 1), padding=((1, 1), (1, 1)),
        feature_group_count=Cin, dimension_numbers=("NCHW", "OIHW", "NCHW"))
    pw = jax.lax.conv_general_dilated(
        dw, w_pw, window_strides=(1, 1), padding="VALID",
        dimension_numbers=("NCHW", "OIHW", "NCHW"))
    y = jnp.maximum(pw, 0.0)
    mean = jnp.mean(y, axis=(0, 2, 3), keepdims=True)
    var = jnp.mean((y - mean) ** 2, axis=(0, 2, 3), keepdims=True)
    return (gamma[None, :, None, None] * (y - mean) * jax.lax.rsqrt(var + BN_EPS)
            + beta[None, :, None, None])


if __name__ == "__main__":
    Cin, Cout, H, W = 4, 8, 16, 16
    key = jax.random.PRNGKey(0)
    kx1, kx2, kdw, kpw = jax.random.split(key, 4)
    w_dw = jax.random.normal(kdw, (Cin, 1, 3, 3), dtype=jnp.float32) * 0.1     # depthwise weight
    w_pw = jax.random.normal(kpw, (Cout, Cin, 1, 1), dtype=jnp.float32) * 0.1  # pointwise weight
    gamma = jnp.ones((Cout,), jnp.float32)    # BatchNorm2d default init
    beta = jnp.zeros((Cout,), jnp.float32)

    # Fused single-step path (the shapes this module is exercised at).
    x = jax.random.normal(kx1, (2, Cin, H, W), dtype=jnp.float32)
    out = jax.block_until_ready(depthwise_separable_block(x, w_dw, w_pw, gamma, beta))
    ref = jax.block_until_ready(_reference(x, w_dw, w_pw, gamma, beta))
    np.testing.assert_allclose(np.asarray(out), np.asarray(ref), rtol=1e-4, atol=1e-4)

    # Batched two-pass fallback, exercised explicitly so the large-batch path is verified too.
    xb = jax.random.normal(kx2, (4, Cin, H, W), dtype=jnp.float32)
    outb = jax.block_until_ready(
        depthwise_separable_block(xb, w_dw, w_pw, gamma, beta, force_two_pass=True))
    refb = jax.block_until_ready(_reference(xb, w_dw, w_pw, gamma, beta))
    np.testing.assert_allclose(np.asarray(outb), np.asarray(refb), rtol=1e-4, atol=1e-4)

    print("KERNEL_OK")
</pallas_src>

<mosaic_0001>
module attributes {stable_mosaic.version = 11 : i64} {
  func.func @_dsb_fused_kernel(%arg0: i32, %arg1: memref<8x256xf32, #tpu.memory_space<vmem>>, %arg2: memref<4x256xf32, #tpu.memory_space<vmem>>, %arg3: memref<8x9xf32, #tpu.memory_space<vmem>>, %arg4: memref<8x4xf32, #tpu.memory_space<vmem>>, %arg5: memref<8x1xf32, #tpu.memory_space<vmem>>, %arg6: memref<8x1xf32, #tpu.memory_space<vmem>>, %arg7: memref<16x256xf32, #tpu.memory_space<vmem>>) attributes {dimension_semantics = [#tpu.dimension_semantics<arbitrary>], iteration_bounds = array<i64: 1>, scalar_prefetch = 0 : i64, scratch_operands = 0 : i64, tpu.core_type = #tpu.core_type<tc>, window_params = [{pipeline_mode = #tpu.pipeline_mode<synchronous>, transform_indices = @transform_0, window_bounds = array<i64: 8, 256>}, {pipeline_mode = #tpu.pipeline_mode<synchronous>, transform_indices = @transform_1, window_bounds = array<i64: 4, 256>}, {pipeline_mode = #tpu.pipeline_mode<synchronous>, transform_indices = @transform_2, window_bounds = array<i64: 8, 9>}, {pipeline_mode = #tpu.pipeline_mode<synchronous>, transform_indices = @transform_3, window_bounds = array<i64: 8, 4>}, {pipeline_mode = #tpu.pipeline_mode<synchronous>, transform_indices = @transform_4, window_bounds = array<i64: 8, 1>}, {pipeline_mode = #tpu.pipeline_mode<synchronous>, transform_indices = @transform_5, window_bounds = array<i64: 8, 1>}, {pipeline_mode = #tpu.pipeline_mode<synchronous>, transform_indices = @transform_6, window_bounds = array<i64: 16, 256>}]} {
    %c0 = arith.constant 0 : index
    %c0_0 = arith.constant 0 : index
    %0 = vector.load %arg1[%c0, %c0_0] : memref<8x256xf32, #tpu.memory_space<vmem>>, vector<8x256xf32>
    %c0_1 = arith.constant 0 : index
    %c0_2 = arith.constant 0 : index
    %1 = vector.load %arg2[%c0_1, %c0_2] : memref<4x256xf32, #tpu.memory_space<vmem>>, vector<4x256xf32>
    %c0_3 = arith.constant 0 : index
    %c0_4 = arith.constant 0 : index
    %2 = vector.load %arg3[%c0_3, %c0_4] : memref<8x9xf32, #tpu.memory_space<vmem>>, vector<8x9xf32>
    %c0_5 = arith.constant 0 : index
    %c0_6 = arith.constant 0 : index
    %3 = vector.load %arg4[%c0_5, %c0_6] : memref<8x4xf32, #tpu.memory_space<vmem>>, vector<8x4xf32>
    %4 = vector.extract_strided_slice %1 {offsets = [0, 0], sizes = [1, 256], strides = [1, 1]} : vector<4x256xf32> to vector<1x256xf32>
    %5 = vector.extract_strided_slice %1 {offsets = [1, 0], sizes = [1, 256], strides = [1, 1]} : vector<4x256xf32> to vector<1x256xf32>
    %6 = vector.extract_strided_slice %1 {offsets = [2, 0], sizes = [1, 256], strides = [1, 1]} : vector<4x256xf32> to vector<1x256xf32>
    %7 = vector.extract_strided_slice %1 {offsets = [3, 0], sizes = [1, 256], strides = [1, 1]} : vector<4x256xf32> to vector<1x256xf32>
    %c1_i32 = arith.constant 1 : i32
    %8 = tpu.dynamic_rotate %0 by %c1_i32 dim 1 : vector<8x256xf32>, i32 -> vector<8x256xf32>
    %9 = vector.broadcast %4 : vector<1x256xf32> to vector<8x256xf32>
    %10 = arith.mulf %8, %9 : vector<8x256xf32>
    %c255_i32 = arith.constant 255 : i32
    %11 = tpu.dynamic_rotate %0 by %c255_i32 dim 1 : vector<8x256xf32>, i32 -> vector<8x256xf32>
    %12 = vector.broadcast %5 : vector<1x256xf32> to vector<8x256xf32>
    %13 = arith.mulf %11, %12 : vector<8x256xf32>
    %14 = vector.extract_strided_slice %2 {offsets = [0, 0], sizes = [8, 1], strides = [1, 1]} : vector<8x9xf32> to vector<8x1xf32>
    %15 = vector.broadcast %14 : vector<8x1xf32> to vector<8x256xf32>
    %16 = arith.mulf %10, %15 : vector<8x256xf32>
    %17 = vector.extract_strided_slice %2 {offsets = [0, 1], sizes = [8, 1], strides = [1, 1]} : vector<8x9xf32> to vector<8x1xf32>
    %18 = vector.broadcast %17 : vector<8x1xf32> to vector<8x256xf32>
    %19 = arith.mulf %0, %18 : vector<8x256xf32>
    %20 = arith.addf %16, %19 : vector<8x256xf32>
    %21 = vector.extract_strided_slice %2 {offsets = [0, 2], sizes = [8, 1], strides = [1, 1]} : vector<8x9xf32> to vector<8x1xf32>
    %22 = vector.broadcast %21 : vector<8x1xf32> to vector<8x256xf32>
    %23 = arith.mulf %13, %22 : vector<8x256xf32>
    %24 = arith.addf %20, %23 : vector<8x256xf32>
    %c16_i32 = arith.constant 16 : i32
    %25 = tpu.dynamic_rotate %24 by %c16_i32 dim 1 : vector<8x256xf32>, i32 -> vector<8x256xf32>
    %26 = vector.broadcast %6 : vector<1x256xf32> to vector<8x256xf32>
    %27 = arith.mulf %25, %26 : vector<8x256xf32>
    %28 = vector.extract_strided_slice %2 {offsets = [0, 3], sizes = [8, 1], strides = [1, 1]} : vector<8x9xf32> to vector<8x1xf32>
    %29 = vector.broadcast %28 : vector<8x1xf32> to vector<8x256xf32>
    %30 = arith.mulf %10, %29 : vector<8x256xf32>
    %31 = vector.extract_strided_slice %2 {offsets = [0, 4], sizes = [8, 1], strides = [1, 1]} : vector<8x9xf32> to vector<8x1xf32>
    %32 = vector.broadcast %31 : vector<8x1xf32> to vector<8x256xf32>
    %33 = arith.mulf %0, %32 : vector<8x256xf32>
    %34 = arith.addf %30, %33 : vector<8x256xf32>
    %35 = vector.extract_strided_slice %2 {offsets = [0, 5], sizes = [8, 1], strides = [1, 1]} : vector<8x9xf32> to vector<8x1xf32>
    %36 = vector.broadcast %35 : vector<8x1xf32> to vector<8x256xf32>
    %37 = arith.mulf %13, %36 : vector<8x256xf32>
    %38 = arith.addf %34, %37 : vector<8x256xf32>
    %39 = arith.addf %27, %38 : vector<8x256xf32>
    %40 = vector.extract_strided_slice %2 {offsets = [0, 6], sizes = [8, 1], strides = [1, 1]} : vector<8x9xf32> to vector<8x1xf32>
    %41 = vector.broadcast %40 : vector<8x1xf32> to vector<8x256xf32>
    %42 = arith.mulf %10, %41 : vector<8x256xf32>
    %43 = vector.extract_strided_slice %2 {offsets = [0, 7], sizes = [8, 1], strides = [1, 1]} : vector<8x9xf32> to vector<8x1xf32>
    %44 = vector.broadcast %43 : vector<8x1xf32> to vector<8x256xf32>
    %45 = arith.mulf %0, %44 : vector<8x256xf32>
    %46 = arith.addf %42, %45 : vector<8x256xf32>
    %47 = vector.extract_strided_slice %2 {offsets = [0, 8], sizes = [8, 1], strides = [1, 1]} : vector<8x9xf32> to vector<8x1xf32>
    %48 = vector.broadcast %47 : vector<8x1xf32> to vector<8x256xf32>
    %49 = arith.mulf %13, %48 : vector<8x256xf32>
    %50 = arith.addf %46, %49 : vector<8x256xf32>
    %c240_i32 = arith.constant 240 : i32
    %51 = tpu.dynamic_rotate %50 by %c240_i32 dim 1 : vector<8x256xf32>, i32 -> vector<8x256xf32>
    %52 = vector.broadcast %7 : vector<1x256xf32> to vector<8x256xf32>
    %53 = arith.mulf %51, %52 : vector<8x256xf32>
    %54 = arith.addf %39, %53 : vector<8x256xf32>
    %55 = vector.extract_strided_slice %3 {offsets = [0, 0], sizes = [8, 1], strides = [1, 1]} : vector<8x4xf32> to vector<8x1xf32>
    %56 = vector.extract_strided_slice %54 {offsets = [0, 0], sizes = [1, 256], strides = [1, 1]} : vector<8x256xf32> to vector<1x256xf32>
    %57 = vector.broadcast %55 : vector<8x1xf32> to vector<8x256xf32>
    %58 = vector.broadcast %56 : vector<1x256xf32> to vector<8x256xf32>
    %59 = arith.mulf %57, %58 : vector<8x256xf32>
    %60 = vector.extract_strided_slice %3 {offsets = [0, 1], sizes = [8, 1], strides = [1, 1]} : vector<8x4xf32> to vector<8x1xf32>
    %61 = vector.extract_strided_slice %54 {offsets = [1, 0], sizes = [1, 256], strides = [1, 1]} : vector<8x256xf32> to vector<1x256xf32>
    %62 = vector.broadcast %60 : vector<8x1xf32> to vector<8x256xf32>
    %63 = vector.broadcast %61 : vector<1x256xf32> to vector<8x256xf32>
    %64 = arith.mulf %62, %63 : vector<8x256xf32>
    %65 = arith.addf %59, %64 : vector<8x256xf32>
    %66 = vector.extract_strided_slice %3 {offsets = [0, 2], sizes = [8, 1], strides = [1, 1]} : vector<8x4xf32> to vector<8x1xf32>
    %67 = vector.extract_strided_slice %54 {offsets = [2, 0], sizes = [1, 256], strides = [1, 1]} : vector<8x256xf32> to vector<1x256xf32>
    %68 = vector.broadcast %66 : vector<8x1xf32> to vector<8x256xf32>
    %69 = vector.broadcast %67 : vector<1x256xf32> to vector<8x256xf32>
    %70 = arith.mulf %68, %69 : vector<8x256xf32>
    %71 = arith.addf %65, %70 : vector<8x256xf32>
    %72 = vector.extract_strided_slice %3 {offsets = [0, 3], sizes = [8, 1], strides = [1, 1]} : vector<8x4xf32> to vector<8x1xf32>
    %73 = vector.extract_strided_slice %54 {offsets = [3, 0], sizes = [1, 256], strides = [1, 1]} : vector<8x256xf32> to vector<1x256xf32>
    %74 = vector.broadcast %72 : vector<8x1xf32> to vector<8x256xf32>
    %75 = vector.broadcast %73 : vector<1x256xf32> to vector<8x256xf32>
    %76 = arith.mulf %74, %75 : vector<8x256xf32>
    %77 = arith.addf %71, %76 : vector<8x256xf32>
    %cst = arith.constant 0.000000e+00 : f32
    %78 = vector.broadcast %cst : f32 to vector<8x256xf32>
    %79 = arith.maximumf %77, %78 : vector<8x256xf32>
    %80 = vector.extract_strided_slice %3 {offsets = [0, 0], sizes = [8, 1], strides = [1, 1]} : vector<8x4xf32> to vector<8x1xf32>
    %81 = vector.extract_strided_slice %54 {offsets = [4, 0], sizes = [1, 256], strides = [1, 1]} : vector<8x256xf32> to vector<1x256xf32>
    %82 = vector.broadcast %80 : vector<8x1xf32> to vector<8x256xf32>
    %83 = vector.broadcast %81 : vector<1x256xf32> to vector<8x256xf32>
    %84 = arith.mulf %82, %83 : vector<8x256xf32>
    %85 = vector.extract_strided_slice %3 {offsets = [0, 1], sizes = [8, 1], strides = [1, 1]} : vector<8x4xf32> to vector<8x1xf32>
    %86 = vector.extract_strided_slice %54 {offsets = [5, 0], sizes = [1, 256], strides = [1, 1]} : vector<8x256xf32> to vector<1x256xf32>
    %87 = vector.broadcast %85 : vector<8x1xf32> to vector<8x256xf32>
    %88 = vector.broadcast %86 : vector<1x256xf32> to vector<8x256xf32>
    %89 = arith.mulf %87, %88 : vector<8x256xf32>
    %90 = arith.addf %84, %89 : vector<8x256xf32>
    %91 = vector.extract_strided_slice %3 {offsets = [0, 2], sizes = [8, 1], strides = [1, 1]} : vector<8x4xf32> to vector<8x1xf32>
    %92 = vector.extract_strided_slice %54 {offsets = [6, 0], sizes = [1, 256], strides = [1, 1]} : vector<8x256xf32> to vector<1x256xf32>
    %93 = vector.broadcast %91 : vector<8x1xf32> to vector<8x256xf32>
    %94 = vector.broadcast %92 : vector<1x256xf32> to vector<8x256xf32>
    %95 = arith.mulf %93, %94 : vector<8x256xf32>
    %96 = arith.addf %90, %95 : vector<8x256xf32>
    %97 = vector.extract_strided_slice %3 {offsets = [0, 3], sizes = [8, 1], strides = [1, 1]} : vector<8x4xf32> to vector<8x1xf32>
    %98 = vector.extract_strided_slice %54 {offsets = [7, 0], sizes = [1, 256], strides = [1, 1]} : vector<8x256xf32> to vector<1x256xf32>
    %99 = vector.broadcast %97 : vector<8x1xf32> to vector<8x256xf32>
    %100 = vector.broadcast %98 : vector<1x256xf32> to vector<8x256xf32>
    %101 = arith.mulf %99, %100 : vector<8x256xf32>
    %102 = arith.addf %96, %101 : vector<8x256xf32>
    %cst_7 = arith.constant 0.000000e+00 : f32
    %103 = vector.broadcast %cst_7 : f32 to vector<8x256xf32>
    %104 = arith.maximumf %102, %103 : vector<8x256xf32>
    %cst_8 = arith.constant dense<0.000000e+00> : vector<8xf32>
    %105 = vector.multi_reduction <add>, %79, %cst_8 [1] : vector<8x256xf32> to vector<8xf32>
    %106 = vector.shape_cast %105 : vector<8xf32> to vector<8x1xf32>
    %cst_9 = arith.constant dense<0.000000e+00> : vector<8xf32>
    %107 = vector.multi_reduction <add>, %104, %cst_9 [1] : vector<8x256xf32> to vector<8xf32>
    %108 = vector.shape_cast %107 : vector<8xf32> to vector<8x1xf32>
    %109 = arith.addf %106, %108 : vector<8x1xf32>
    %cst_10 = arith.constant 0.001953125 : f32
    %110 = vector.broadcast %cst_10 : f32 to vector<8x1xf32>
    %111 = arith.mulf %109, %110 : vector<8x1xf32>
    %112 = vector.broadcast %111 : vector<8x1xf32> to vector<8x256xf32>
    %113 = arith.subf %79, %112 : vector<8x256xf32>
    %114 = arith.mulf %113, %113 : vector<8x256xf32>
    %cst_11 = arith.constant dense<0.000000e+00> : vector<8xf32>
    %115 = vector.multi_reduction <add>, %114, %cst_11 [1] : vector<8x256xf32> to vector<8xf32>
    %116 = vector.shape_cast %115 : vector<8xf32> to vector<8x1xf32>
    %117 = vector.broadcast %111 : vector<8x1xf32> to vector<8x256xf32>
    %118 = arith.subf %104, %117 : vector<8x256xf32>
    %119 = arith.mulf %118, %118 : vector<8x256xf32>
    %cst_12 = arith.constant dense<0.000000e+00> : vector<8xf32>
    %120 = vector.multi_reduction <add>, %119, %cst_12 [1] : vector<8x256xf32> to vector<8xf32>
    %121 = vector.shape_cast %120 : vector<8xf32> to vector<8x1xf32>
    %122 = arith.addf %116, %121 : vector<8x1xf32>
    %cst_13 = arith.constant 0.001953125 : f32
    %123 = vector.broadcast %cst_13 : f32 to vector<8x1xf32>
    %124 = arith.mulf %122, %123 : vector<8x1xf32>
    %c0_14 = arith.constant 0 : index
    %c0_15 = arith.constant 0 : index
    %125 = vector.load %arg5[%c0_14, %c0_15] : memref<8x1xf32, #tpu.memory_space<vmem>>, vector<8x1xf32>
    %cst_16 = arith.constant 9.99999974E-6 : f32
    %126 = vector.broadcast %cst_16 : f32 to vector<8x1xf32>
    %127 = arith.addf %124, %126 : vector<8x1xf32>
    %128 = math.rsqrt %127 : vector<8x1xf32>
    %129 = arith.mulf %125, %128 : vector<8x1xf32>
    %c0_17 = arith.constant 0 : index
    %c0_18 = arith.constant 0 : index
    %130 = vector.load %arg6[%c0_17, %c0_18] : memref<8x1xf32, #tpu.memory_space<vmem>>, vector<8x1xf32>
    %131 = arith.mulf %111, %129 : vector<8x1xf32>
    %132 = arith.subf %130, %131 : vector<8x1xf32>
    %133 = vector.broadcast %129 : vector<8x1xf32> to vector<8x256xf32>
    %134 = arith.mulf %79, %133 : vector<8x256xf32>
    %135 = vector.broadcast %132 : vector<8x1xf32> to vector<8x256xf32>
    %136 = arith.addf %134, %135 : vector<8x256xf32>
    %c0_19 = arith.constant 0 : index
    %c0_20 = arith.constant 0 : index
    %137 = vector.load %arg7[%c0_19, %c0_20] : memref<16x256xf32, #tpu.memory_space<vmem>>, vector<8x256xf32>
    tpu.vector_store %arg7[%c0_19, %c0_20], %136 {strides = array<i32>} : memref<16x256xf32, #tpu.memory_space<vmem>>, vector<8x256xf32>,
    %138 = vector.broadcast %129 : vector<8x1xf32> to vector<8x256xf32>
    %139 = arith.mulf %104, %138 : vector<8x256xf32>
    %140 = vector.broadcast %132 : vector<8x1xf32> to vector<8x256xf32>
    %141 = arith.addf %139, %140 : vector<8x256xf32>
    %c8 = arith.constant 8 : index
    %c0_21 = arith.constant 0 : index
    %142 = vector.load %arg7[%c8, %c0_21] : memref<16x256xf32, #tpu.memory_space<vmem>>, vector<8x256xf32>
    tpu.vector_store %arg7[%c8, %c0_21], %141 {strides = array<i32>} : memref<16x256xf32, #tpu.memory_space<vmem>>, vector<8x256xf32>,
    return
  }
  func.func @transform_0(%arg0: i32) -> (i32, i32) {
    %c0_i32 = arith.constant 0 : i32
    %c0_i32_0 = arith.constant 0 : i32
    %c0_i32_1 = arith.constant 0 : i32
    return %c0_i32, %c0_i32_0 : i32, i32
  }
  func.func @transform_1(%arg0: i32) -> (i32, i32) {
    %c0_i32 = arith.constant 0 : i32
    %c0_i32_0 = arith.constant 0 : i32
    %c0_i32_1 = arith.constant 0 : i32
    return %c0_i32, %c0_i32_0 : i32, i32
  }
  func.func @transform_2(%arg0: i32) -> (i32, i32) {
    %c0_i32 = arith.constant 0 : i32
    %c0_i32_0 = arith.constant 0 : i32
    %c0_i32_1 = arith.constant 0 : i32
    return %c0_i32, %c0_i32_0 : i32, i32
  }
  func.func @transform_3(%arg0: i32) -> (i32, i32) {
    %c0_i32 = arith.constant 0 : i32
    %c0_i32_0 = arith.constant 0 : i32
    %c0_i32_1 = arith.constant 0 : i32
    return %c0_i32, %c0_i32_0 : i32, i32
  }
  func.func @transform_4(%arg0: i32) -> (i32, i32) {
    %c0_i32 = arith.constant 0 : i32
    %c0_i32_0 = arith.constant 0 : i32
    %c0_i32_1 = arith.constant 0 : i32
    return %c0_i32, %c0_i32_0 : i32, i32
  }
  func.func @transform_5(%arg0: i32) -> (i32, i32) {
    %c0_i32 = arith.constant 0 : i32
    %c0_i32_0 = arith.constant 0 : i32
    %c0_i32_1 = arith.constant 0 : i32
    return %c0_i32, %c0_i32_0 : i32, i32
  }
  func.func @transform_6(%arg0: i32) -> (i32, i32) {
    %c0_i32 = arith.constant 0 : i32
    %c0_i32_0 = arith.constant 0 : i32
    %c0_i32_1 = arith.constant 0 : i32
    return %c0_i32, %c0_i32_0 : i32, i32
  }
}

</mosaic_0001>

<llo_original>
// kernel: depthwise_separable_block.1
$region0: #{depthwise_separable_block.1}
  #allocation0 [shape = 'u32[]', space=smem, size = 0x4, offset = 0x4, fixed_abs, tag = 'smem constant byte address 0x4 - core index']
  #allocation1 [shape = 'u32[144,128]{1,0:T(1,128)}', space=vmem, size = 0x12000, scoped, tag = 'internal scratch']
  %s0 = inlined_call_operand.vmem [shape: f32[8,256], index: 0, kind: input, shape index: {}]
  %s1 = inlined_call_operand.vmem [shape: f32[4,256], index: 1, kind: input, shape index: {}]
  %s2 = inlined_call_operand.vmem [shape: f32[8,9], index: 2, kind: input, shape index: {}]
  %s3 = inlined_call_operand.vmem [shape: f32[8,4], index: 3, kind: input, shape index: {}]
  %s4 = inlined_call_operand.vmem [shape: f32[8,1], index: 4, kind: input, shape index: {}]
  %s5 = inlined_call_operand.vmem [shape: f32[8,1], index: 5, kind: input, shape index: {}]
  %s6 = inlined_call_operand.vmem [shape: f32[16,256], index: 6, kind: output, shape index: {}]
  %s7 = sld [smem:[#allocation0]]
  $region34: #{depthwise_separable_block.1} parent=0
    _
  %s9 = ssub.s32 1, %s7
  %s10 = scalar_select 0, %s9, %s7
  // Predicated region
  $region2: #{depthwise_separable_block.1} parent=0 // pred_check
    _
  $region3: #{depthwise_separable_block.1} parent=0 // pred_check_branch
    %12 = sbr.rel (0) target = $region5
  $region4: #{depthwise_separable_block.1} parent=0 // pred_region
    _
  $region5: #{depthwise_separable_block.1} parent=0 // pred_fallthru
    _
  // Predicated region
  $region6: #{depthwise_separable_block.1} parent=0 // pred_check
    _
  $region7: #{depthwise_separable_block.1} parent=0 // pred_check_branch
    %14 = sbr.rel (0) target = $region9
  $region8: #{depthwise_separable_block.1} parent=0 // pred_region
    _
  $region9: #{depthwise_separable_block.1} parent=0 // pred_fallthru
    _
  // Predicated region
  $region10: #{depthwise_separable_block.1} parent=0 // pred_check
    _
  $region11: #{depthwise_separable_block.1} parent=0 // pred_check_branch
    %16 = sbr.rel (0) target = $region13
  $region12: #{depthwise_separable_block.1} parent=0 // pred_region
    _
  $region13: #{depthwise_separable_block.1} parent=0 // pred_fallthru
    _
  // Predicated region
  $region14: #{depthwise_separable_block.1} parent=0 // pred_check
    _
  $region15: #{depthwise_separable_block.1} parent=0 // pred_check_branch
    %18 = sbr.rel (0) target = $region17
  $region16: #{depthwise_separable_block.1} parent=0 // pred_region
    _
  $region17: #{depthwise_separable_block.1} parent=0 // pred_fallthru
    _
  // Predicated region
  $region18: #{depthwise_separable_block.1} parent=0 // pred_check
    _
  $region19: #{depthwise_separable_block.1} parent=0 // pred_check_branch
    %20 = sbr.rel (0) target = $region21
  $region20: #{depthwise_separable_block.1} parent=0 // pred_region
    _
  $region21: #{depthwise_separable_block.1} parent=0 // pred_fallthru
    _
  // Predicated region
  $region22: #{depthwise_separable_block.1} parent=0 // pred_check
    _
  $region23: #{depthwise_separable_block.1} parent=0 // pred_check_branch
    %22 = sbr.rel (0) target = $region25
  $region24: #{depthwise_separable_block.1} parent=0 // pred_region
    _
  $region25: #{depthwise_separable_block.1} parent=0 // pred_fallthru
    _
  %v23 = vld [vmem:[%s0] sm:$0xff]
  %v24 = vld [vmem:[%s0 + $0x8] sm:$0xff]
  %v25 = vld [vmem:[%s1] sm:$0xff]
  %v26 = vld [vmem:[%s2] sm:$0xff]
  %v27 = vld [vmem:[%s3] sm:$0xff]
  %28 = vrot.lane.b32.xlu0 %v23, 1
  %v29 = vpop.permute.xlu0 %28
  %30 = vrot.lane.b32.xlu0 %v24, 1
  %v31 = vpop.permute.xlu0 %30
  %v32 = vlaneseq
  %v33 = vand.u32 %v32, 127
  %vm34 = vcmp.lt.s32.totalorder %v33, 1
  %v35 = vsel %vm34, %v29, %v31
  %v36 = vsel %vm34, %v31, %v29
  %v38 = vlaneseq
  %v39 = vshrl.u32 %v38, 7
  %v40 = vsub.s32 0, %v39
  %v41 = vrot.slane %v25, %v40
  %v42 = vlaneseq
  %v43 = vshrl.u32 %v42, 7
  %v44 = vsub.s32 4, %v43
  %v45 = vrot.slane %v25, %v44
  %v48 = vlaneseq
  %v49 = vshrl.u32 %v48, 7
  %v50 = vsub.s32 0, %v49
  %v51 = vrot.slane %v41, %v50
  %v52 = vlaneseq
  %v53 = vshrl.u32 %v52, 7
  %v54 = vsub.s32 0, %v53
  %v55 = vrot.slane %v45, %v54
  %v56 = vmul.f32 %v36, %v51
  %v57 = vmul.f32 %v35, %v55
  %58 = vrot.lane.b32.xlu0 %v23, 127
  %v59 = vpop.permute.xlu0 %58
  %60 = vrot.lane.b32.xlu0 %v24, 127
  %v61 = vpop.permute.xlu0 %60
  %vm62 = vcmp.lt.s32.totalorder %v33, 127
  %v63 = vsel %vm62, %v59, %v61
  %v64 = vsel %vm62, %v61, %v59
  %v65 = vlaneseq
  %v66 = vshrl.u32 %v65, 7
  %v67 = vsub.s32 1, %v66
  %v68 = vrot.slane %v25, %v67
  %v69 = vlaneseq
  %v70 = vshrl.u32 %v69, 7
  %v71 = vsub.s32 5, %v70
  %v72 = vrot.slane %v25, %v71
  %v75 = vlaneseq
  %v76 = vshrl.u32 %v75, 7
  %v77 = vsub.s32 1, %v76
  %v78 = vrot.slane %v68, %v77
  %v79 = vlaneseq
  %v80 = vshrl.u32 %v79, 7
  %v81 = vsub.s32 1, %v80
  %v82 = vrot.slane %v72, %v81
  %v83 = vmul.f32 %v63, %v78
  %v84 = vmul.f32 %v64, %v82
  %86 = vset.pattern.permute.xlu0 0
  %87 = vperm.xlu0 %86, %v26
  %v88 = vpop.permute.xlu0 %87
  %v90 = vmul.f32 %v56, %v88
  %v91 = vmul.f32 %v57, %v88
  %92 = vset.pattern.permute.xlu0 1
  %93 = vperm.xlu0 %92, %v26
  %v94 = vpop.permute.xlu0 %93
  %v96 = vmul.f32 %v23, %v94
  %v97 = vmul.f32 %v24, %v94
  %v98 = vadd.f32 %v90, %v96
  %v99 = vadd.f32 %v91, %v97
  %100 = vset.pattern.permute.xlu0 2
  %101 = vperm.xlu0 %100, %v26
  %v102 = vpop.permute.xlu0 %101
  %v104 = vmul.f32 %v83, %v102
  %v105 = vmul.f32 %v84, %v102
  %v106 = vadd.f32 %v98, %v104
  %v107 = vadd.f32 %v99, %v105
  %108 = vrot.lane.b32.xlu0 %v106, 16
  %v109 = vpop.permute.xlu0 %108
  %110 = vrot.lane.b32.xlu0 %v107, 16
  %v111 = vpop.permute.xlu0 %110
  %vm112 = vcmp.lt.s32.totalorder %v33, 16
  %v113 = vsel %vm112, %v109, %v111
  %v114 = vsel %vm112, %v111, %v109
  %v115 = vlaneseq
  %v116 = vshrl.u32 %v115, 7
  %v117 = vsub.s32 2, %v116
  %v118 = vrot.slane %v25, %v117
  %v119 = vlaneseq
  %v120 = vshrl.u32 %v119, 7
  %v121 = vsub.s32 6, %v120
  %v122 = vrot.slane %v25, %v121
  %v125 = vlaneseq
  %v126 = vshrl.u32 %v125, 7
  %v127 = vsub.s32 2, %v126
  %v128 = vrot.slane %v118, %v127
  %v129 = vlaneseq
  %v130 = vshrl.u32 %v129, 7
  %v131 = vsub.s32 2, %v130
  %v132 = vrot.slane %v122, %v131
  %v133 = vmul.f32 %v114, %v128
  %v134 = vmul.f32 %v113, %v132
  %135 = vset.pattern.permute.xlu0 3
  %136 = vperm.xlu0 %135, %v26
  %v137 = vpop.permute.xlu0 %136
  %v139 = vmul.f32 %v56, %v137
  %v140 = vmul.f32 %v57, %v137
  %141 = vset.pattern.permute.xlu0 4
  %142 = vperm.xlu0 %141, %v26
  %v143 = vpop.permute.xlu0 %142
  %v145 = vmul.f32 %v23, %v143
  %v146 = vmul.f32 %v24, %v143
  %v147 = vadd.f32 %v139, %v145
  %v148 = vadd.f32 %v140, %v146
  %149 = vset.pattern.permute.xlu0 5
  %150 = vperm.xlu0 %149, %v26
  %v151 = vpop.permute.xlu0 %150
  %v153 = vmul.f32 %v83, %v151
  %v154 = vmul.f32 %v84, %v151
  %v155 = vadd.f32 %v147, %v153
  %v156 = vadd.f32 %v148, %v154
  %v157 = vadd.f32 %v133, %v155
  %v158 = vadd.f32 %v134, %v156
  %159 = vset.pattern.permute.xlu0 6
  %160 = vperm.xlu0 %159, %v26
  %v161 = vpop.permute.xlu0 %160
  %v163 = vmul.f32 %v56, %v161
  %v164 = vmul.f32 %v57, %v161
  %165 = vset.pattern.permute.xlu0 7
  %166 = vperm.xlu0 %165, %v26
  %v167 = vpop.permute.xlu0 %166
  %v169 = vmul.f32 %v23, %v167
  %v170 = vmul.f32 %v24, %v167
  %v171 = vadd.f32 %v163, %v169
  %v172 = vadd.f32 %v164, %v170
  %173 = vset.pattern.permute.xlu0 8
  %174 = vperm.xlu0 %173, %v26
  %v175 = vpop.permute.xlu0 %174
  %v177 = vmul.f32 %v83, %v175
  %v178 = vmul.f32 %v84, %v175
  %v179 = vadd.f32 %v171, %v177
  %v180 = vadd.f32 %v172, %v178
  %181 = vrot.lane.b32.xlu0 %v179, 112
  %v182 = vpop.permute.xlu0 %181
  %183 = vrot.lane.b32.xlu0 %v180, 112
  %v184 = vpop.permute.xlu0 %183
  %vm185 = vcmp.lt.s32.totalorder %v33, 112
  %v186 = vsel %vm185, %v182, %v184
  %v187 = vsel %vm185, %v184, %v182
  %v188 = vlaneseq
  %v189 = vshrl.u32 %v188, 7
  %v190 = vsub.s32 3, %v189
  %v191 = vrot.slane %v25, %v190
  %v192 = vlaneseq
  %v193 = vshrl.u32 %v192, 7
  %v194 = vsub.s32 7, %v193
  %v195 = vrot.slane %v25, %v194
  %v198 = vlaneseq
  %v199 = vshrl.u32 %v198, 7
  %v200 = vsub.s32 3, %v199
  %v201 = vrot.slane %v191, %v200
  %v202 = vlaneseq
  %v203 = vshrl.u32 %v202, 7
  %v204 = vsub.s32 3, %v203
  %v205 = vrot.slane %v195, %v204
  %v206 = vmul.f32 %v186, %v201
  %v207 = vmul.f32 %v187, %v205
  %v208 = vadd.f32 %v157, %v206
  %v209 = vadd.f32 %v158, %v207
  %211 = vset.pattern.permute.xlu0 0
  %212 = vperm.xlu0 %211, %v27
  %v213 = vpop.permute.xlu0 %212
  %v215 = vlaneseq
  %v216 = vshrl.u32 %v215, 7
  %v217 = vsub.s32 0, %v216
  %v218 = vrot.slane %v208, %v217
  %v219 = vlaneseq
  %v220 = vshrl.u32 %v219, 7
  %v221 = vsub.s32 0, %v220
  %v222 = vrot.slane %v209, %v221
  %v223 = vmul.f32 %v213, %v218
  %v224 = vmul.f32 %v213, %v222
  %225 = vset.pattern.permute.xlu0 1
  %226 = vperm.xlu0 %225, %v27
  %v227 = vpop.permute.xlu0 %226
  %v229 = vlaneseq
  %v230 = vshrl.u32 %v229, 7
  %v231 = vsub.s32 1, %v230
  %v232 = vrot.slane %v208, %v231
  %v233 = vlaneseq
  %v234 = vshrl.u32 %v233, 7
  %v235 = vsub.s32 1, %v234
  %v236 = vrot.slane %v209, %v235
  %v237 = vmul.f32 %v227, %v232
  %v238 = vmul.f32 %v227, %v236
  %v239 = vadd.f32 %v223, %v237
  %v240 = vadd.f32 %v224, %v238
  %241 = vset.pattern.permute.xlu0 2
  %242 = vperm.xlu0 %241, %v27
  %v243 = vpop.permute.xlu0 %242
  %v245 = vlaneseq
  %v246 = vshrl.u32 %v245, 7
  %v247 = vsub.s32 2, %v246
  %v248 = vrot.slane %v208, %v247
  %v249 = vlaneseq
  %v250 = vshrl.u32 %v249, 7
  %v251 = vsub.s32 2, %v250
  %v252 = vrot.slane %v209, %v251
  %v253 = vmul.f32 %v243, %v248
  %v254 = vmul.f32 %v243, %v252
  %v255 = vadd.f32 %v239, %v253
  %v256 = vadd.f32 %v240, %v254
  %257 = vset.pattern.permute.xlu0 3
  %258 = vperm.xlu0 %257, %v27
  %v259 = vpop.permute.xlu0 %258
  %v261 = vlaneseq
  %v262 = vshrl.u32 %v261, 7
  %v263 = vsub.s32 3, %v262
  %v264 = vrot.slane %v208, %v263
  %v265 = vlaneseq
  %v266 = vshrl.u32 %v265, 7
  %v267 = vsub.s32 3, %v266
  %v268 = vrot.slane %v209, %v267
  %v269 = vmul.f32 %v259, %v264
  %v270 = vmul.f32 %v259, %v268
  %v271 = vadd.f32 %v255, %v269
  %v272 = vadd.f32 %v256, %v270
  %v273 = vmax.f32 %v271, 0.0
  %v274 = vmax.f32 %v272, 0.0
  %v275 = vlaneseq
  %v276 = vshrl.u32 %v275, 7
  %v277 = vsub.s32 4, %v276
  %v278 = vrot.slane %v208, %v277
  %v279 = vlaneseq
  %v280 = vshrl.u32 %v279, 7
  %v281 = vsub.s32 4, %v280
  %v282 = vrot.slane %v209, %v281
  %v283 = vmul.f32 %v213, %v278
  %v284 = vmul.f32 %v213, %v282
  %v285 = vlaneseq
  %v286 = vshrl.u32 %v285, 7
  %v287 = vsub.s32 5, %v286
  %v288 = vrot.slane %v208, %v287
  %v289 = vlaneseq
  %v290 = vshrl.u32 %v289, 7
  %v291 = vsub.s32 5, %v290
  %v292 = vrot.slane %v209, %v291
  %v293 = vmul.f32 %v227, %v288
  %v294 = vmul.f32 %v227, %v292
  %v295 = vadd.f32 %v283, %v293
  %v296 = vadd.f32 %v284, %v294
  %v297 = vlaneseq
  %v298 = vshrl.u32 %v297, 7
  %v299 = vsub.s32 6, %v298
  %v300 = vrot.slane %v208, %v299
  %v301 = vlaneseq
  %v302 = vshrl.u32 %v301, 7
  %v303 = vsub.s32 6, %v302
  %v304 = vrot.slane %v209, %v303
  %v305 = vmul.f32 %v243, %v300
  %v306 = vmul.f32 %v243, %v304
  %v307 = vadd.f32 %v295, %v305
  %v308 = vadd.f32 %v296, %v306
  %v309 = vlaneseq
  %v310 = vshrl.u32 %v309, 7
  %v311 = vsub.s32 7, %v310
  %v312 = vrot.slane %v208, %v311
  %v313 = vlaneseq
  %v314 = vshrl.u32 %v313, 7
  %v315 = vsub.s32 7, %v314
  %v316 = vrot.slane %v209, %v315
  %v317 = vmul.f32 %v259, %v312
  %v318 = vmul.f32 %v259, %v316
  %v319 = vadd.f32 %v307, %v317
  %v320 = vadd.f32 %v308, %v318
  %v321 = vmax.f32 %v319, 0.0
  %v322 = vmax.f32 %v320, 0.0
  %v323 = vadd.f32 %v273, %v274
  %324 = vadd.xlane.f32.xlu0 %v323
  %v325 = vpop.xlane.xlu0 %324
  %v326 = vadd.f32 %v321, %v322
  %327 = vadd.xlane.f32.xlu0 %v326
  %v328 = vpop.xlane.xlu0 %327
  %v329 = vadd.f32 %v325, %v328
  %v330 = vmul.f32 %v329, 0.001953125
  %v331 = vsub.f32 %v273, %v330
  %v332 = vsub.f32 %v274, %v330
  %v333 = vmul.f32 %v331, %v331
  %v334 = vmul.f32 %v332, %v332
  %v335 = vadd.f32 %v333, %v334
  %336 = vadd.xlane.f32.xlu0 %v335
  %v337 = vpop.xlane.xlu0 %336
  %v338 = vsub.f32 %v321, %v330
  %v339 = vsub.f32 %v322, %v330
  %v340 = vmul.f32 %v338, %v338
  %v341 = vmul.f32 %v339, %v339
  %v342 = vadd.f32 %v340, %v341
  %343 = vadd.xlane.f32.xlu0 %v342
  %v344 = vpop.xlane.xlu0 %343
  %v345 = vadd.f32 %v337, %v344
  %v346 = vmul.f32 %v345, 0.001953125
  %v347 = vld [vmem:[%s4] sm:$0xff]
  %v348 = vadd.f32 %v346, 1e-05
  %v349 = vrsqrt.pop %v348
  %v350 = vmul.f32 %v347, %v349
  %v351 = vld [vmem:[%s5] sm:$0xff]
  %v352 = vmul.f32 %v330, %v350
  %v353 = vsub.f32 %v351, %v352
  %355 = vset.pattern.permute.xlu0 0
  %356 = vperm.xlu0 %355, %v350
  %v357 = vpop.permute.xlu0 %356
  %v359 = vmul.f32 %v273, %v357
  %v360 = vmul.f32 %v274, %v357
  %362 = vset.pattern.permute.xlu0 0
  %363 = vperm.xlu0 %362, %v353
  %v364 = vpop.permute.xlu0 %363
  %v366 = vadd.f32 %v359, %v364
  %v367 = vadd.f32 %v360, %v364
  %368 = vst [vmem:[%s6] sm:$0xff] %v366
  %369 = vst [vmem:[%s6 + $0x8] sm:$0xff] %v367
  %v370 = vmul.f32 %v321, %v357
  %v371 = vmul.f32 %v322, %v357
  %v372 = vadd.f32 %v370, %v364
  %v373 = vadd.f32 %v371, %v364
  %374 = vst [vmem:[%s6 + $0x10] sm:$0xff] %v372
  %375 = vst [vmem:[%s6 + $0x18] sm:$0xff] %v373
  // Predicated region
  $region26: #{depthwise_separable_block.1} parent=0 // pred_check
    _
  $region27: #{depthwise_separable_block.1} parent=0 // pred_check_branch
    %377 = sbr.rel (0) target = $region29
  $region28: #{depthwise_separable_block.1} parent=0 // pred_region
    _
  $region29: #{depthwise_separable_block.1} parent=0 // pred_fallthru
    _
  // Predicated region
  $region30: #{depthwise_separable_block.1} parent=0 // pred_check
    _
  $region31: #{depthwise_separable_block.1} parent=0 // pred_check_branch
    %379 = sbr.rel (0) target = $region33
  $region32: #{depthwise_separable_block.1} parent=0 // pred_region
    _
  $region33: #{depthwise_separable_block.1} parent=0 // pred_fallthru
    _

</llo_original>
